<compile_context>
chip_gen: v7x
topology: tpu7x:2x2x1
jax: 0.10.0
libtpu: 0.0.40
codegen_flags: <defaults>
</compile_context>

<pallas_src>
import functools

import jax
import jax.numpy as jnp
from jax.experimental import pallas as pl
from jax.experimental.pallas import tpu as pltpu


# ----------------------------------------------------------------------------
# Shared in-kernel math: stats_net + fold normalization/affine into scale/offset
# ----------------------------------------------------------------------------
def _scale_offset_from_stats(mean2, inv_std2, w1, b1, w2g, b2g, w2b, b2b, g, b):
    """mean2/inv_std2: (n, C) f32.  Params: w1 (Cq, C), b1 (1, Cq),
    w2g/w2b (C, Cq), b2g/b2b/g/b (1, C).  Returns (scale2, off2): (n, C)."""
    dn = (((1,), (1,)), ((), ()))  # contract channel axis of lhs with dim-1 of rhs
    h1 = jnp.maximum(
        jax.lax.dot_general(mean2, w1, dn, preferred_element_type=jnp.float32) + b1,
        0.0)                                                           # (n, Cq)
    a_g = jax.lax.dot_general(h1, w2g, dn,
                              preferred_element_type=jnp.float32) + b2g   # (n, C)
    a_b = jax.lax.dot_general(h1, w2b, dn,
                              preferred_element_type=jnp.float32) + b2b   # (n, C)
    # out = x * scale + offset  (single slab pass)
    scale2 = (1.0 + a_g) * g * inv_std2
    off2 = a_b * b - scale2 * mean2
    return scale2, off2


# ----------------------------------------------------------------------------
# Fused path: whole (bb, C, HW) slab per grid step (stats + apply in one kernel)
# ----------------------------------------------------------------------------
def _afn_fused_kernel(x_ref, w1_ref, b1_ref, w2g_ref, b2g_ref, w2b_ref, b2b_ref,
                      gamma_ref, beta_ref, o_ref, *, eps, hw):
    inv_hw = 1.0 / hw
    # torch.var_mean defaults to the unbiased (N-1) estimator; guarded so a
    # degenerate H*W == 1 input does not trap (PyTorch itself yields NaN there).
    inv_nm1 = 1.0 / max(hw - 1, 1)

    # Pass 1 (read): fused sum + sum-of-squares. The f32 copy's live range is
    # bounded to this pass (x_ref is re-read for the apply pass below).
    xs = x_ref[...].astype(jnp.float32)                 # (bb, C, HW)
    s = jnp.sum(xs, axis=2, keepdims=True)              # (bb, C, 1)
    ss = jnp.sum(xs * xs, axis=2, keepdims=True)        # (bb, C, 1)

    mean = s * inv_hw
    var = jnp.maximum((ss - mean * s) * inv_nm1, 0.0)   # clamp cancellation noise
    inv_std = jax.lax.rsqrt(var + eps)                  # EUP slot (cheap)

    scale2, off2 = _scale_offset_from_stats(
        mean[..., 0], inv_std[..., 0],
        w1_ref[...], b1_ref[...], w2g_ref[...], b2g_ref[...],
        w2b_ref[...], b2b_ref[...], gamma_ref[...], beta_ref[...])   # (bb, C)

    # Pass 2 (read + write): single slab pass.
    o_ref[...] = (x_ref[...].astype(jnp.float32) * scale2[..., None]
                  + off2[..., None]).astype(o_ref.dtype)


# ----------------------------------------------------------------------------
# Split path (spatial tiling fallback): stats kernel + apply kernel
# ----------------------------------------------------------------------------
def _afn_stats_kernel(x_ref, w1_ref, b1_ref, w2g_ref, b2g_ref, w2b_ref, b2b_ref,
                      gamma_ref, beta_ref, scale_ref, offset_ref,
                      s_acc, ss_acc, *, eps, hw, hw_chunk):
    j = pl.program_id(1)

    @pl.when(j == 0)
    def _():
        s_acc[...] = jnp.zeros_like(s_acc)
        ss_acc[...] = jnp.zeros_like(ss_acc)

    x = x_ref[...].astype(jnp.float32)                  # (1, C, hw_chunk)
    if hw % hw_chunk != 0:
        # Mask the ragged last spatial chunk (out-of-bounds lanes read garbage).
        col = jax.lax.broadcasted_iota(jnp.int32, x.shape, 2) + j * hw_chunk
        x = jnp.where(col < hw, x, 0.0)
    s_acc[...] += jnp.sum(x, axis=2, keepdims=True)
    ss_acc[...] += jnp.sum(x * x, axis=2, keepdims=True)

    @pl.when(j == pl.num_programs(1) - 1)
    def _():
        inv_hw = 1.0 / hw
        inv_nm1 = 1.0 / max(hw - 1, 1)
        s = s_acc[...]
        mean = s * inv_hw
        var = jnp.maximum((ss_acc[...] - mean * s) * inv_nm1, 0.0)
        inv_std = jax.lax.rsqrt(var + eps)
        scale2, off2 = _scale_offset_from_stats(
            mean[..., 0], inv_std[..., 0],
            w1_ref[...], b1_ref[...], w2g_ref[...], b2g_ref[...],
            w2b_ref[...], b2b_ref[...], gamma_ref[...], beta_ref[...])
        scale_ref[...] = scale2[..., None]               # (1, C, 1)
        offset_ref[...] = off2[..., None]


def _afn_apply_kernel(x_ref, scale_ref, offset_ref, o_ref):
    o_ref[...] = (x_ref[...].astype(jnp.float32) * scale_ref[...]
                  + offset_ref[...]).astype(o_ref.dtype)


# ----------------------------------------------------------------------------
# Wrapper
# ----------------------------------------------------------------------------
def _vmem_capacity_bytes():
    try:
        return int(pltpu.get_tpu_info().vmem_capacity_bytes)
    except Exception:
        return 64 << 20        # conservative default: v7x per-TensorCore VMEM


def adaptive_feature_norm(x, w1, b1, w2, b2, gamma, beta, *, eps=1e-5,
                          _debug_block_b=None, _debug_split_hw_chunk=None):
    """x: (B, C, H, W) NCHW.  Params in PyTorch-native shapes:
       w1 (C//4, C), b1 (C//4,), w2 (2C, C//4), b2 (2C,), gamma (C,), beta (C,)
       (extra singleton dims on params are accepted)."""
    B, C, H, W = x.shape
    Cq = C // 4
    assert Cq >= 1, "num_features must be >= 4"
    HW = H * W

    # Unpadded (B, C, HW) view.  A block dim equal to the full array dim is
    # exempt from the 128-divisibility rule, so no pad / slice HBM passes.
    xr = x.reshape(B, C, HW)

    f32 = jnp.float32
    w1m = w1.reshape(Cq, C).astype(f32)
    b1r = b1.reshape(1, Cq).astype(f32)
    w2m = w2.reshape(2 * C, Cq).astype(f32)
    w2g, w2b = w2m[:C], w2m[C:]             # split here: no in-kernel slicing
    b2v = b2.reshape(1, 2 * C).astype(f32)
    b2g, b2b = b2v[:, :C], b2v[:, C:]
    grow = gamma.reshape(1, C).astype(f32)
    brow = beta.reshape(1, C).astype(f32)
    params = (w1m, b1r, w2g, b2g, w2b, b2b, grow, brow)

    itemsize = x.dtype.itemsize
    vmem_cap = _vmem_capacity_bytes()
    two_cores = vmem_cap <= (64 << 20)      # v7x-like: 64 MiB/TC, 2 TensorCores

    # Param VMEM footprint in f32 (BlockSpec double-buffers every input; the
    # budget accounts for it instead of relying on pipeline_mode tweaks).
    param_bytes = 4 * (Cq * C + 2 * C * Cq + Cq + 4 * C)
    param_db = 2 * param_bytes

    # Generation-aware slab budget for the big (bb, C, HW) blocks.
    if two_cores:
        slab_budget = max(4 << 20, vmem_cap // 3)
        hard_cap = vmem_cap - (8 << 20)
    else:
        slab_budget = min(vmem_cap // 2, 64 << 20)
        hard_cap = min(vmem_cap - (8 << 20), 100 << 20)

    per_b = C * HW * itemsize
    per_b_total = 4 * per_b + 4 * C * HW    # 2x in + 2x out (dbl-buffered) + one f32 pass copy
    avail = slab_budget - param_db

    use_split = (_debug_split_hw_chunk is not None) or (avail < per_b_total)
    out_shape = jax.ShapeDtypeStruct((B, C, HW), x.dtype)

    if not use_split:
        # ------------------------- fused path --------------------------------
        bb = int(min(B, max(1, avail // per_b_total)))
        if two_cores and B >= 2:
            bb = min(bb, max(1, B // 2))     # keep >= 2 grid steps for both TCs
        if _debug_block_b is not None:
            bb = int(min(B, max(1, _debug_block_b)))
        nb = int(pl.cdiv(B, bb))             # ragged last batch block is fine

        needed = bb * per_b_total + param_db + (2 << 20)
        vmem_limit = int(min(hard_cap, max(24 << 20, needed)))

        const1 = lambda i: (0, 0)
        grid_spec = pltpu.PrefetchScalarGridSpec(
            num_scalar_prefetch=0,
            grid=(nb,),
            in_specs=[
                pl.BlockSpec((bb, C, HW), lambda i: (i, 0, 0)),   # x
                pl.BlockSpec((Cq, C), const1),                    # w1
                pl.BlockSpec((1, Cq), const1),                    # b1
                pl.BlockSpec((C, Cq), const1),                    # w2 (gamma half)
                pl.BlockSpec((1, C), const1),                     # b2 (gamma half)
                pl.BlockSpec((C, Cq), const1),                    # w2 (beta half)
                pl.BlockSpec((1, C), const1),                     # b2 (beta half)
                pl.BlockSpec((1, C), const1),                     # gamma
                pl.BlockSpec((1, C), const1),                     # beta
            ],
            out_specs=pl.BlockSpec((bb, C, HW), lambda i: (i, 0, 0)),
        )
        out = pl.pallas_call(
            functools.partial(_afn_fused_kernel, eps=eps, hw=HW),
            out_shape=out_shape,
            grid_spec=grid_spec,
            compiler_params=pltpu.CompilerParams(
                dimension_semantics=("parallel",),
                vmem_limit_bytes=vmem_limit),
        )(xr, *params)
    else:
        # ---------- split path: spatial (HW) tiling, 3 HBM passes total ------
        cost_per_col = C * 128 * (4 * itemsize + 4)

        def _choose_chunk(n_cols):
            c = 128 * max(1, int(n_cols))
            return HW if c >= HW else c

        hw_chunk = _choose_chunk(avail // cost_per_col)
        if _debug_split_hw_chunk is not None:
            hw_chunk = _choose_chunk(pl.cdiv(int(_debug_split_hw_chunk), 128))
        nj = int(pl.cdiv(HW, hw_chunk))

        needed = C * hw_chunk * (4 * itemsize + 4) + param_db + (4 << 20)
        vmem_limit = int(min(hard_cap, max(24 << 20, needed)))

        const2 = lambda i, j: (0, 0)
        stats_grid_spec = pltpu.PrefetchScalarGridSpec(
            num_scalar_prefetch=0,
            grid=(B, nj),
            in_specs=[
                pl.BlockSpec((1, C, hw_chunk), lambda i, j: (i, 0, j)),   # x
                pl.BlockSpec((Cq, C), const2),
                pl.BlockSpec((1, Cq), const2),
                pl.BlockSpec((C, Cq), const2),
                pl.BlockSpec((1, C), const2),
                pl.BlockSpec((C, Cq), const2),
                pl.BlockSpec((1, C), const2),
                pl.BlockSpec((1, C), const2),
                pl.BlockSpec((1, C), const2),
            ],
            out_specs=[
                pl.BlockSpec((1, C, 1), lambda i, j: (i, 0, 0)),          # scale
                pl.BlockSpec((1, C, 1), lambda i, j: (i, 0, 0)),          # offset
            ],
            scratch_shapes=[pltpu.VMEM((1, C, 1), jnp.float32),
                            pltpu.VMEM((1, C, 1), jnp.float32)],
        )
        scale, offset = pl.pallas_call(
            functools.partial(_afn_stats_kernel, eps=eps, hw=HW, hw_chunk=hw_chunk),
            out_shape=(jax.ShapeDtypeStruct((B, C, 1), jnp.float32),
                       jax.ShapeDtypeStruct((B, C, 1), jnp.float32)),
            grid_spec=stats_grid_spec,
            compiler_params=pltpu.CompilerParams(
                dimension_semantics=("parallel", "arbitrary"),
                vmem_limit_bytes=vmem_limit),
        )(xr, *params)

        apply_grid_spec = pltpu.PrefetchScalarGridSpec(
            num_scalar_prefetch=0,
            grid=(B, nj),
            in_specs=[
                pl.BlockSpec((1, C, hw_chunk), lambda i, j: (i, 0, j)),   # x
                pl.BlockSpec((1, C, 1), lambda i, j: (i, 0, 0)),          # scale
                pl.BlockSpec((1, C, 1), lambda i, j: (i, 0, 0)),          # offset
            ],
            out_specs=pl.BlockSpec((1, C, hw_chunk), lambda i, j: (i, 0, j)),
        )
        out = pl.pallas_call(
            _afn_apply_kernel,
            out_shape=out_shape,
            grid_spec=apply_grid_spec,
            compiler_params=pltpu.CompilerParams(
                dimension_semantics=("parallel", "parallel"),
                vmem_limit_bytes=vmem_limit),
        )(xr, scale, offset)

    return out.reshape(B, C, H, W)


# ----------------------------------------------------------------------------
# Pure-JAX reference (replica of the PyTorch forward, NCHW)
# ----------------------------------------------------------------------------
def _reference_forward(x, w1, b1, w2, b2, gamma, beta, eps=1e-5):
    B, C, H, W = x.shape
    mean = jnp.mean(x, axis=(2, 3), keepdims=True)
    var = jnp.var(x, axis=(2, 3), keepdims=True, ddof=1)   # unbiased, like torch
    x_norm = (x - mean) / jnp.sqrt(var + eps)
    pooled = mean[..., 0, 0]                               # (B, C)
    h1 = jnp.maximum(pooled @ w1.reshape(C // 4, C).T + b1.reshape(-1), 0.0)
    stats = h1 @ w2.reshape(2 * C, C // 4).T + b2.reshape(-1)
    ag = stats[:, :C][:, :, None, None]
    ab = stats[:, C:][:, :, None, None]
    g = gamma.reshape(1, C, 1, 1)
    bt = beta.reshape(1, C, 1, 1)
    return (1.0 + ag) * g * x_norm + ab * bt


if __name__ == "__main__":
    eps = 1e-5
    key = jax.random.PRNGKey(0)

    def make_case(k, B, C, H, W):
        ks = jax.random.split(k, 7)
        x = jax.random.normal(ks[0], (B, C, H, W), jnp.float32)
        w1 = jax.random.normal(ks[1], (C // 4, C), jnp.float32) * 0.1
        b1 = jax.random.normal(ks[2], (C // 4,), jnp.float32) * 0.1
        w2 = jax.random.normal(ks[3], (2 * C, C // 4), jnp.float32) * 0.1
        b2 = jax.random.normal(ks[4], (2 * C,), jnp.float32) * 0.1
        gamma = 1.0 + 0.1 * jax.random.normal(ks[5], (C,), jnp.float32)
        beta = 0.1 * jax.random.normal(ks[6], (C,), jnp.float32)
        return x, w1, b1, w2, b2, gamma, beta

    k1, k2, k3, k4 = jax.random.split(key, 4)
    cases = [
        # (key, shape, kwargs)
        (k1, (2, 8, 16, 16), {}),                               # fused, HW % 128 == 0
        (k2, (3, 8, 10, 10), {}),                               # fused, unpadded HW=100
        (k3, (3, 8, 10, 10), {"_debug_block_b": 2}),            # fused, ragged batch grid
        (k4, (2, 8, 17, 17), {"_debug_split_hw_chunk": 128}),   # split path, 3 HW chunks
    ]
    for kk, shape, kwargs in cases:
        args = make_case(kk, *shape)
        out = adaptive_feature_norm(*args, eps=eps, **kwargs)
        out = jax.block_until_ready(out)
        ref = _reference_forward(*args, eps=eps)
        assert out.shape == args[0].shape
        err = float(jnp.max(jnp.abs(out - ref)))
        assert jnp.allclose(out, ref, rtol=1e-4, atol=1e-4), \
            f"max err {err} for shape {shape} kwargs {kwargs}"

    print("KERNEL_OK")
</pallas_src>

<mosaic_0001>
module attributes {stable_mosaic.version = 11 : i64} {
  func.func @_afn_fused_kernel(%arg0: i32, %arg1: memref<1x8x256xf32, #tpu.memory_space<vmem>>, %arg2: memref<2x8xf32, #tpu.memory_space<vmem>>, %arg3: memref<1x2xf32, #tpu.memory_space<vmem>>, %arg4: memref<8x2xf32, #tpu.memory_space<vmem>>, %arg5: memref<1x8xf32, #tpu.memory_space<vmem>>, %arg6: memref<8x2xf32, #tpu.memory_space<vmem>>, %arg7: memref<1x8xf32, #tpu.memory_space<vmem>>, %arg8: memref<1x8xf32, #tpu.memory_space<vmem>>, %arg9: memref<1x8xf32, #tpu.memory_space<vmem>>, %arg10: memref<1x8x256xf32, #tpu.memory_space<vmem>>) attributes {dimension_semantics = [#tpu.dimension_semantics<parallel>], iteration_bounds = array<i64: 2>, scalar_prefetch = 0 : i64, scratch_operands = 0 : i64, tpu.core_type = #tpu.core_type<tc>, window_params = [{transform_indices = @transform_0, window_bounds = array<i64: 1, 8, 256>}, {pipeline_mode = #tpu.pipeline_mode<synchronous>, transform_indices = @transform_1, window_bounds = array<i64: 2, 8>}, {pipeline_mode = #tpu.pipeline_mode<synchronous>, transform_indices = @transform_2, window_bounds = array<i64: 1, 2>}, {pipeline_mode = #tpu.pipeline_mode<synchronous>, transform_indices = @transform_3, window_bounds = array<i64: 8, 2>}, {pipeline_mode = #tpu.pipeline_mode<synchronous>, transform_indices = @transform_4, window_bounds = array<i64: 1, 8>}, {pipeline_mode = #tpu.pipeline_mode<synchronous>, transform_indices = @transform_5, window_bounds = array<i64: 8, 2>}, {pipeline_mode = #tpu.pipeline_mode<synchronous>, transform_indices = @transform_6, window_bounds = array<i64: 1, 8>}, {pipeline_mode = #tpu.pipeline_mode<synchronous>, transform_indices = @transform_7, window_bounds = array<i64: 1, 8>}, {pipeline_mode = #tpu.pipeline_mode<synchronous>, transform_indices = @transform_8, window_bounds = array<i64: 1, 8>}, {transform_indices = @transform_9, window_bounds = array<i64: 1, 8, 256>}]} {
    %c0 = arith.constant 0 : index
    %c0_0 = arith.constant 0 : index
    %c0_1 = arith.constant 0 : index
    %0 = vector.load %arg1[%c0, %c0_0, %c0_1] : memref<1x8x256xf32, #tpu.memory_space<vmem>>, vector<1x8x256xf32>
    %cst = arith.constant dense<0.000000e+00> : vector<1x8xf32>
    %1 = vector.multi_reduction <add>, %0, %cst [2] : vector<1x8x256xf32> to vector<1x8xf32>
    %2 = vector.shape_cast %1 : vector<1x8xf32> to vector<1x8x1xf32>
    %3 = arith.mulf %0, %0 : vector<1x8x256xf32>
    %cst_2 = arith.constant dense<0.000000e+00> : vector<1x8xf32>
    %4 = vector.multi_reduction <add>, %3, %cst_2 [2] : vector<1x8x256xf32> to vector<1x8xf32>
    %5 = vector.shape_cast %4 : vector<1x8xf32> to vector<1x8x1xf32>
    %cst_3 = arith.constant 3.906250e-03 : f32
    %6 = vector.broadcast %cst_3 : f32 to vector<1x8x1xf32>
    %7 = arith.mulf %2, %6 : vector<1x8x1xf32>
    %8 = arith.mulf %7, %2 : vector<1x8x1xf32>
    %9 = arith.subf %5, %8 : vector<1x8x1xf32>
    %cst_4 = arith.constant 0.00392156886 : f32
    %10 = vector.broadcast %cst_4 : f32 to vector<1x8x1xf32>
    %11 = arith.mulf %9, %10 : vector<1x8x1xf32>
    %cst_5 = arith.constant 0.000000e+00 : f32
    %12 = vector.broadcast %cst_5 : f32 to vector<1x8x1xf32>
    %13 = arith.maximumf %11, %12 : vector<1x8x1xf32>
    %cst_6 = arith.constant 9.99999974E-6 : f32
    %14 = vector.broadcast %cst_6 : f32 to vector<1x8x1xf32>
    %15 = arith.addf %13, %14 : vector<1x8x1xf32>
    %16 = math.rsqrt %15 : vector<1x8x1xf32>
    %17 = vector.shape_cast %7 : vector<1x8x1xf32> to vector<1x8xf32>
    %18 = vector.shape_cast %16 : vector<1x8x1xf32> to vector<1x8xf32>
    %c0_7 = arith.constant 0 : index
    %c0_8 = arith.constant 0 : index
    %19 = vector.load %arg2[%c0_7, %c0_8] : memref<2x8xf32, #tpu.memory_space<vmem>>, vector<2x8xf32>
    %c0_9 = arith.constant 0 : index
    %c0_10 = arith.constant 0 : index
    %20 = vector.load %arg3[%c0_9, %c0_10] : memref<1x2xf32, #tpu.memory_space<vmem>>, vector<1x2xf32>
    %c0_11 = arith.constant 0 : index
    %c0_12 = arith.constant 0 : index
    %21 = vector.load %arg4[%c0_11, %c0_12] : memref<8x2xf32, #tpu.memory_space<vmem>>, vector<8x2xf32>
    %c0_13 = arith.constant 0 : index
    %c0_14 = arith.constant 0 : index
    %22 = vector.load %arg5[%c0_13, %c0_14] : memref<1x8xf32, #tpu.memory_space<vmem>>, vector<1x8xf32>
    %c0_15 = arith.constant 0 : index
    %c0_16 = arith.constant 0 : index
    %23 = vector.load %arg6[%c0_15, %c0_16] : memref<8x2xf32, #tpu.memory_space<vmem>>, vector<8x2xf32>
    %c0_17 = arith.constant 0 : index
    %c0_18 = arith.constant 0 : index
    %24 = vector.load %arg7[%c0_17, %c0_18] : memref<1x8xf32, #tpu.memory_space<vmem>>, vector<1x8xf32>
    %c0_19 = arith.constant 0 : index
    %c0_20 = arith.constant 0 : index
    %25 = vector.load %arg8[%c0_19, %c0_20] : memref<1x8xf32, #tpu.memory_space<vmem>>, vector<1x8xf32>
    %c0_21 = arith.constant 0 : index
    %c0_22 = arith.constant 0 : index
    %26 = vector.load %arg9[%c0_21, %c0_22] : memref<1x8xf32, #tpu.memory_space<vmem>>, vector<1x8xf32>
    %cst_23 = arith.constant dense<0.000000e+00> : vector<1x2xf32>
    %27 = tpu.matmul %17, %19, %cst_23 {dimension_numbers = #tpu.dot_dimension_numbers<[1], [1], [0], [0], [0, 0, 1, 0], [], []>} : vector<1x8xf32>, vector<2x8xf32>, vector<1x2xf32> -> vector<1x2xf32>
    %28 = arith.addf %27, %20 : vector<1x2xf32>
    %cst_24 = arith.constant 0.000000e+00 : f32
    %29 = vector.broadcast %cst_24 : f32 to vector<1x2xf32>
    %30 = arith.maximumf %28, %29 : vector<1x2xf32>
    %cst_25 = arith.constant dense<0.000000e+00> : vector<1x8xf32>
    %31 = tpu.matmul %30, %21, %cst_25 {dimension_numbers = #tpu.dot_dimension_numbers<[1], [1], [0], [0], [0, 0, 1, 0], [], []>} : vector<1x2xf32>, vector<8x2xf32>, vector<1x8xf32> -> vector<1x8xf32>
    %32 = arith.addf %31, %22 : vector<1x8xf32>
    %cst_26 = arith.constant dense<0.000000e+00> : vector<1x8xf32>
    %33 = tpu.matmul %30, %23, %cst_26 {dimension_numbers = #tpu.dot_dimension_numbers<[1], [1], [0], [0], [0, 0, 1, 0], [], []>} : vector<1x2xf32>, vector<8x2xf32>, vector<1x8xf32> -> vector<1x8xf32>
    %34 = arith.addf %33, %24 : vector<1x8xf32>
    %cst_27 = arith.constant 1.000000e+00 : f32
    %35 = vector.broadcast %cst_27 : f32 to vector<1x8xf32>
    %36 = arith.addf %35, %32 : vector<1x8xf32>
    %37 = arith.mulf %36, %25 : vector<1x8xf32>
    %38 = arith.mulf %37, %18 : vector<1x8xf32>
    %39 = arith.mulf %34, %26 : vector<1x8xf32>
    %40 = arith.mulf %38, %17 : vector<1x8xf32>
    %41 = arith.subf %39, %40 : vector<1x8xf32>
    %c0_28 = arith.constant 0 : index
    %c0_29 = arith.constant 0 : index
    %c0_30 = arith.constant 0 : index
    %42 = vector.load %arg1[%c0_28, %c0_29, %c0_30] : memref<1x8x256xf32, #tpu.memory_space<vmem>>, vector<1x8x256xf32>
    %43 = vector.shape_cast %38 : vector<1x8xf32> to vector<1x8x1xf32>
    %44 = vector.broadcast %43 : vector<1x8x1xf32> to vector<1x8x256xf32>
    %45 = arith.mulf %42, %44 : vector<1x8x256xf32>
    %46 = vector.shape_cast %41 : vector<1x8xf32> to vector<1x8x1xf32>
    %47 = vector.broadcast %46 : vector<1x8x1xf32> to vector<1x8x256xf32>
    %48 = arith.addf %45, %47 : vector<1x8x256xf32>
    %c0_31 = arith.constant 0 : index
    %c0_32 = arith.constant 0 : index
    %c0_33 = arith.constant 0 : index
    %49 = vector.load %arg10[%c0_31, %c0_32, %c0_33] : memref<1x8x256xf32, #tpu.memory_space<vmem>>, vector<1x8x256xf32>
    tpu.vector_store %arg10[%c0_31, %c0_32, %c0_33], %48 {strides = array<i32>} : memref<1x8x256xf32, #tpu.memory_space<vmem>>, vector<1x8x256xf32>,
    return
  }
  func.func @transform_0(%arg0: i32) -> (i32, i32, i32) {
    %c0_i32 = arith.constant 0 : i32
    %c0_i32_0 = arith.constant 0 : i32
    %c0_i32_1 = arith.constant 0 : i32
    return %arg0, %c0_i32, %c0_i32_0 : i32, i32, i32
  }
  func.func @transform_1(%arg0: i32) -> (i32, i32) {
    %c0_i32 = arith.constant 0 : i32
    %c0_i32_0 = arith.constant 0 : i32
    %c0_i32_1 = arith.constant 0 : i32
    return %c0_i32, %c0_i32_0 : i32, i32
  }
  func.func @transform_2(%arg0: i32) -> (i32, i32) {
    %c0_i32 = arith.constant 0 : i32
    %c0_i32_0 = arith.constant 0 : i32
    %c0_i32_1 = arith.constant 0 : i32
    return %c0_i32, %c0_i32_0 : i32, i32
  }
  func.func @transform_3(%arg0: i32) -> (i32, i32) {
    %c0_i32 = arith.constant 0 : i32
    %c0_i32_0 = arith.constant 0 : i32
    %c0_i32_1 = arith.constant 0 : i32
    return %c0_i32, %c0_i32_0 : i32, i32
  }
  func.func @transform_4(%arg0: i32) -> (i32, i32) {
    %c0_i32 = arith.constant 0 : i32
    %c0_i32_0 = arith.constant 0 : i32
    %c0_i32_1 = arith.constant 0 : i32
    return %c0_i32, %c0_i32_0 : i32, i32
  }
  func.func @transform_5(%arg0: i32) -> (i32, i32) {
    %c0_i32 = arith.constant 0 : i32
    %c0_i32_0 = arith.constant 0 : i32
    %c0_i32_1 = arith.constant 0 : i32
    return %c0_i32, %c0_i32_0 : i32, i32
  }
  func.func @transform_6(%arg0: i32) -> (i32, i32) {
    %c0_i32 = arith.constant 0 : i32
    %c0_i32_0 = arith.constant 0 : i32
    %c0_i32_1 = arith.constant 0 : i32
    return %c0_i32, %c0_i32_0 : i32, i32
  }
  func.func @transform_7(%arg0: i32) -> (i32, i32) {
    %c0_i32 = arith.constant 0 : i32
    %c0_i32_0 = arith.constant 0 : i32
    %c0_i32_1 = arith.constant 0 : i32
    return %c0_i32, %c0_i32_0 : i32, i32
  }
  func.func @transform_8(%arg0: i32) -> (i32, i32) {
    %c0_i32 = arith.constant 0 : i32
    %c0_i32_0 = arith.constant 0 : i32
    %c0_i32_1 = arith.constant 0 : i32
    return %c0_i32, %c0_i32_0 : i32, i32
  }
  func.func @transform_9(%arg0: i32) -> (i32, i32, i32) {
    %c0_i32 = arith.constant 0 : i32
    %c0_i32_0 = arith.constant 0 : i32
    %c0_i32_1 = arith.constant 0 : i32
    return %arg0, %c0_i32, %c0_i32_0 : i32, i32, i32
  }
}

</mosaic_0001>

<llo_original>
// kernel: tpu_custom_call.1
$region0: #{tpu_custom_call.1}
  #allocation0 [shape = 'u32[]', space=smem, size = 0x4, offset = 0x4, fixed_abs, tag = 'smem constant byte address 0x4 - core index']
  #allocation1 [shape = 'u32[144,128]{1,0:T(1,128)}', space=vmem, size = 0x12000, scoped, tag = 'internal scratch']
  %s0 = inlined_call_operand.hbm [shape: f32[2,8,256], index: 0, kind: input, shape index: {}]
  %s1 = inlined_call_operand.vmem [shape: f32[2,8], index: 1, kind: input, shape index: {}]
  %s2 = inlined_call_operand.vmem [shape: f32[1,2], index: 2, kind: input, shape index: {}]
  %s3 = inlined_call_operand.vmem [shape: f32[8,2], index: 3, kind: input, shape index: {}]
  %s4 = inlined_call_operand.vmem [shape: f32[1,8], index: 4, kind: input, shape index: {}]
  %s5 = inlined_call_operand.vmem [shape: f32[8,2], index: 5, kind: input, shape index: {}]
  %s6 = inlined_call_operand.vmem [shape: f32[1,8], index: 6, kind: input, shape index: {}]
  %s7 = inlined_call_operand.vmem [shape: f32[1,8], index: 7, kind: input, shape index: {}]
  %s8 = inlined_call_operand.vmem [shape: f32[1,8], index: 8, kind: input, shape index: {}]
  %s9 = inlined_call_operand.hbm [shape: f32[2,8,256], index: 9, kind: output, shape index: {}]
  %s10 = sld [smem:[#allocation0]]
  $region73: #{tpu_custom_call.1} parent=0
    _
  %s12 = ssub.s32 1, %s10
  %s13 = scalar_select 0, %s12, %s10
  $region1: #{tpu_custom_call.1} parent=0
    #allocation2 [shape = 'u8[16384]{0}', space=vmem, size = 0x4000, scoped, tag = 'input window, operand 0']
    #allocation3 [shape = 's32[2]{0}', space=sflag, size = 0x8, scoped, tag = 'scoped memory for tpu_custom_call.1']
    #allocation4 [shape = 's32[2]{0}', space=sflag, size = 0x8, scoped, tag = 'scoped memory for tpu_custom_call.1']
    #allocation5 [shape = 'u8[16384]{0}', space=vmem, size = 0x4000, scoped, tag = 'output window, operand 0']
    %14 = vsyncpa [#allocation3], 0
    %s15 = scalar_lea.sflag [#allocation3], 1
    %16 = vsyncpa %s15, 0
    %17 = vsyncpa [#allocation4], 0
    %s18 = scalar_lea.sflag [#allocation4], 1
    %19 = vsyncpa %s18, 0
    loop: start=0, step=1, limit=4
    $region2: #{tpu_custom_call.1} parent=1 // loop_pre_header
      _
    $region3: #{tpu_custom_call.1} parent=1 // loop_header
      %s21 = sphi 0, %s25
      %p22 = scmp.ge.s32.totalorder %s21, 4
      %s31 = sphi 0, %s33
      %s34 = sphi 0, %s31
      %s35 = sphi 0, %s34
      %s51 = sphi 0, %s35
      %s55 = sphi 0, %s55
      %s57 = sphi 0, %s55
      %s58 = sphi 0, %s57
      %s72 = sphi 0, %s58
      %s76 = sphi 0, %s76
      %s78 = sphi 0, %s76
      %s79 = sphi 0, %s78
      %s93 = sphi 0, %s79
      %s97 = sphi 0, %s97
      %s99 = sphi 0, %s97
      %s100 = sphi 0, %s99
      %s114 = sphi 0, %s100
      %s118 = sphi 0, %s118
      %s120 = sphi 0, %s118
      %s121 = sphi 0, %s120
      %s135 = sphi 0, %s121
      %s139 = sphi 0, %s139
      %s141 = sphi 0, %s139
      %s142 = sphi 0, %s141
      %s156 = sphi 0, %s142
      %s160 = sphi 0, %s160
      %s162 = sphi 0, %s160
      %s163 = sphi 0, %s162
      %s177 = sphi 0, %s163
      %s181 = sphi 0, %s181
      %s183 = sphi 0, %s181
      %s184 = sphi 0, %s183
      %s198 = sphi 0, %s184
      %s202 = sphi 0, %s202
      %s204 = sphi 0, %s202
      %s205 = sphi 0, %s204
      %s219 = sphi 0, %s205
      %s225 = sphi 0, %s227
      %s228 = sphi 0, %s225
      %s229 = sphi 0, %s228
      %s245 = sphi 0, %s229
    $region4: #{tpu_custom_call.1} parent=1 // loop_header_branch
      %24 = sbr.rel (%p22) target = $region8
    $region5: #{tpu_custom_call.1} parent=1 // loop_body
      %s26 = ssub.s32 %s21, 1
      %s27 = ssub.s32 %s21, 2
      %s28 = sadd.s32 %s21, 1
      %s29 = ssub.s32 %s21, %s28
      %p30 = scmp.eq.s32.totalorder %s29, 0
      %s32 = sadd.s32 %s31, 1
      %s33 = scalar_select %p30, %s31, %s32
      %p36 = pneg %p30
      %p37 = scmp.eq.s32.totalorder %s21, 1
      %p38 = por %p36, %p37
      %p39 = scmp.ne.s32.totalorder %s31, %s34
      %p40 = scmp.eq.s32.totalorder %s21, 0
      %p41 = por %p39, %p40
      %p42 = scmp.ne.s32.totalorder %s31, %s34
      %p43 = scmp.eq.s32.totalorder %s26, 1
      %p44 = por %p42, %p43
      %p45 = scmp.ne.s32.totalorder %s34, %s35
      %p46 = scmp.eq.s32.totalorder %s26, 0
      %p47 = por %p45, %p46
      %p48 = scmp.ne.s32.totalorder %s34, %s35
      %p49 = scmp.eq.s32.totalorder %s27, 1
      %p50 = por %p48, %p49
      %p52 = scmp.ne.s32.totalorder %s35, %s51
      %p53 = scmp.eq.s32.totalorder %s27, 0
      %p54 = por %p52, %p53
      %s56 = sadd.s32 %s55, 1
      %p59 = scmp.eq.s32.totalorder %s21, 1
      %p60 = scmp.ne.s32.totalorder %s55, %s57
      %p61 = scmp.eq.s32.totalorder %s21, 0
      %p62 = por %p60, %p61
      %p63 = scmp.ne.s32.totalorder %s55, %s57
      %p64 = scmp.eq.s32.totalorder %s26, 1
      %p65 = por %p63, %p64
      %p66 = scmp.ne.s32.totalorder %s57, %s58
      %p67 = scmp.eq.s32.totalorder %s26, 0
      %p68 = por %p66, %p67
      %p69 = scmp.ne.s32.totalorder %s57, %s58
      %p70 = scmp.eq.s32.totalorder %s27, 1
      %p71 = por %p69, %p70
      %p73 = scmp.ne.s32.totalorder %s58, %s72
      %p74 = scmp.eq.s32.totalorder %s27, 0
      %p75 = por %p73, %p74
      %s77 = sadd.s32 %s76, 1
      %p80 = scmp.eq.s32.totalorder %s21, 1
      %p81 = scmp.ne.s32.totalorder %s76, %s78
      %p82 = scmp.eq.s32.totalorder %s21, 0
      %p83 = por %p81, %p82
      %p84 = scmp.ne.s32.totalorder %s76, %s78
      %p85 = scmp.eq.s32.totalorder %s26, 1
      %p86 = por %p84, %p85
      %p87 = scmp.ne.s32.totalorder %s78, %s79
      %p88 = scmp.eq.s32.totalorder %s26, 0
      %p89 = por %p87, %p88
      %p90 = scmp.ne.s32.totalorder %s78, %s79
      %p91 = scmp.eq.s32.totalorder %s27, 1
      %p92 = por %p90, %p91
      %p94 = scmp.ne.s32.totalorder %s79, %s93
      %p95 = scmp.eq.s32.totalorder %s27, 0
      %p96 = por %p94, %p95
      %s98 = sadd.s32 %s97, 1
      %p101 = scmp.eq.s32.totalorder %s21, 1
      %p102 = scmp.ne.s32.totalorder %s97, %s99
      %p103 = scmp.eq.s32.totalorder %s21, 0
      %p104 = por %p102, %p103
      %p105 = scmp.ne.s32.totalorder %s97, %s99
      %p106 = scmp.eq.s32.totalorder %s26, 1
      %p107 = por %p105, %p106
      %p108 = scmp.ne.s32.totalorder %s99, %s100
      %p109 = scmp.eq.s32.totalorder %s26, 0
      %p110 = por %p108, %p109
      %p111 = scmp.ne.s32.totalorder %s99, %s100
      %p112 = scmp.eq.s32.totalorder %s27, 1
      %p113 = por %p111, %p112
      %p115 = scmp.ne.s32.totalorder %s100, %s114
      %p116 = scmp.eq.s32.totalorder %s27, 0
      %p117 = por %p115, %p116
      %s119 = sadd.s32 %s118, 1
      %p122 = scmp.eq.s32.totalorder %s21, 1
      %p123 = scmp.ne.s32.totalorder %s118, %s120
      %p124 = scmp.eq.s32.totalorder %s21, 0
      %p125 = por %p123, %p124
      %p126 = scmp.ne.s32.totalorder %s118, %s120
      %p127 = scmp.eq.s32.totalorder %s26, 1
      %p128 = por %p126, %p127
      %p129 = scmp.ne.s32.totalorder %s120, %s121
      %p130 = scmp.eq.s32.totalorder %s26, 0
      %p131 = por %p129, %p130
      %p132 = scmp.ne.s32.totalorder %s120, %s121
      %p133 = scmp.eq.s32.totalorder %s27, 1
      %p134 = por %p132, %p133
      %p136 = scmp.ne.s32.totalorder %s121, %s135
      %p137 = scmp.eq.s32.totalorder %s27, 0
      %p138 = por %p136, %p137
      %s140 = sadd.s32 %s139, 1
      %p143 = scmp.eq.s32.totalorder %s21, 1
      %p144 = scmp.ne.s32.totalorder %s139, %s141
      %p145 = scmp.eq.s32.totalorder %s21, 0
      %p146 = por %p144, %p145
      %p147 = scmp.ne.s32.totalorder %s139, %s141
      %p148 = scmp.eq.s32.totalorder %s26, 1
      %p149 = por %p147, %p148
      %p150 = scmp.ne.s32.totalorder %s141, %s142
      %p151 = scmp.eq.s32.totalorder %s26, 0
      %p152 = por %p150, %p151
      %p153 = scmp.ne.s32.totalorder %s141, %s142
      %p154 = scmp.eq.s32.totalorder %s27, 1
      %p155 = por %p153, %p154
      %p157 = scmp.ne.s32.totalorder %s142, %s156
      %p158 = scmp.eq.s32.totalorder %s27, 0
      %p159 = por %p157, %p158
      %s161 = sadd.s32 %s160, 1
      %p164 = scmp.eq.s32.totalorder %s21, 1
      %p165 = scmp.ne.s32.totalorder %s160, %s162
      %p166 = scmp.eq.s32.totalorder %s21, 0
      %p167 = por %p165, %p166
      %p168 = scmp.ne.s32.totalorder %s160, %s162
      %p169 = scmp.eq.s32.totalorder %s26, 1
      %p170 = por %p168, %p169
      %p171 = scmp.ne.s32.totalorder %s162, %s163
      %p172 = scmp.eq.s32.totalorder %s26, 0
      %p173 = por %p171, %p172
      %p174 = scmp.ne.s32.totalorder %s162, %s163
      %p175 = scmp.eq.s32.totalorder %s27, 1
      %p176 = por %p174, %p175
      %p178 = scmp.ne.s32.totalorder %s163, %s177
      %p179 = scmp.eq.s32.totalorder %s27, 0
      %p180 = por %p178, %p179
      %s182 = sadd.s32 %s181, 1
      %p185 = scmp.eq.s32.totalorder %s21, 1
      %p186 = scmp.ne.s32.totalorder %s181, %s183
      %p187 = scmp.eq.s32.totalorder %s21, 0
      %p188 = por %p186, %p187
      %p189 = scmp.ne.s32.totalorder %s181, %s183
      %p190 = scmp.eq.s32.totalorder %s26, 1
      %p191 = por %p189, %p190
      %p192 = scmp.ne.s32.totalorder %s183, %s184
      %p193 = scmp.eq.s32.totalorder %s26, 0
      %p194 = por %p192, %p193
      %p195 = scmp.ne.s32.totalorder %s183, %s184
      %p196 = scmp.eq.s32.totalorder %s27, 1
      %p197 = por %p195, %p196
      %p199 = scmp.ne.s32.totalorder %s184, %s198
      %p200 = scmp.eq.s32.totalorder %s27, 0
      %p201 = por %p199, %p200
      %s203 = sadd.s32 %s202, 1
      %p206 = scmp.eq.s32.totalorder %s21, 1
      %p207 = scmp.ne.s32.totalorder %s202, %s204
      %p208 = scmp.eq.s32.totalorder %s21, 0
      %p209 = por %p207, %p208
      %p210 = scmp.ne.s32.totalorder %s202, %s204
      %p211 = scmp.eq.s32.totalorder %s26, 1
      %p212 = por %p210, %p211
      %p213 = scmp.ne.s32.totalorder %s204, %s205
      %p214 = scmp.eq.s32.totalorder %s26, 0
      %p215 = por %p213, %p214
      %p216 = scmp.ne.s32.totalorder %s204, %s205
      %p217 = scmp.eq.s32.totalorder %s27, 1
      %p218 = por %p216, %p217
      %p220 = scmp.ne.s32.totalorder %s205, %s219
      %p221 = scmp.eq.s32.totalorder %s27, 0
      %p222 = por %p220, %p221
      %s223 = ssub.s32 %s21, %s28
      %p224 = scmp.eq.s32.totalorder %s223, 0
      %s226 = sadd.s32 %s225, 1
      %s227 = scalar_select %p224, %s225, %s226
      %p230 = pneg %p224
      %p231 = scmp.eq.s32.totalorder %s21, 1
      %p232 = por %p230, %p231
      %p233 = scmp.ne.s32.totalorder %s225, %s228
      %p234 = scmp.eq.s32.totalorder %s21, 0
      %p235 = por %p233, %p234
      %p236 = scmp.ne.s32.totalorder %s225, %s228
      %p237 = scmp.eq.s32.totalorder %s26, 1
      %p238 = por %p236, %p237
      %p239 = scmp.ne.s32.totalorder %s228, %s229
      %p240 = scmp.eq.s32.totalorder %s26, 0
      %p241 = por %p239, %p240
      %p242 = scmp.ne.s32.totalorder %s228, %s229
      %p243 = scmp.eq.s32.totalorder %s27, 1
      %p244 = por %p242, %p243
      %p246 = scmp.ne.s32.totalorder %s229, %s245
      %p247 = scmp.eq.s32.totalorder %s27, 0
      %p248 = por %p246, %p247
      %p249 = scmp.le.s32.totalorder 1, %s21
      %p250 = scmp.lt.s32.totalorder %s21, 3
      %p251 = pnand %p249, %p250
      %p252 = pneg %p251
      // Predicated region
      $region9: #{tpu_custom_call.1} parent=5 // pred_check
        _
      $region10: #{tpu_custom_call.1} parent=5 // pred_check_branch
        %254 = sbr.rel (%p251) target = $region12
      $region11: #{tpu_custom_call.1} parent=5 // pred_region
        %s255 = ssub.s32 %s21, 1
        // Predicated region
        $region13: #{tpu_custom_call.1} parent=11 // pred_check
          %p256 = pneg %p68
        $region14: #{tpu_custom_call.1} parent=11 // pred_check_branch
          %258 = sbr.rel (%p256) target = $region16
        $region15: #{tpu_custom_call.1} parent=11 // pred_region
          _
        $region16: #{tpu_custom_call.1} parent=11 // pred_fallthru
          _
        // Predicated region
        $region17: #{tpu_custom_call.1} parent=11 // pred_check
          %p259 = pneg %p89
        $region18: #{tpu_custom_call.1} parent=11 // pred_check_branch
          %261 = sbr.rel (%p259) target = $region20
        $region19: #{tpu_custom_call.1} parent=11 // pred_region
          _
        $region20: #{tpu_custom_call.1} parent=11 // pred_fallthru
          _
        // Predicated region
        $region21: #{tpu_custom_call.1} parent=11 // pred_check
          %p262 = pneg %p110
        $region22: #{tpu_custom_call.1} parent=11 // pred_check_branch
          %264 = sbr.rel (%p262) target = $region24
        $region23: #{tpu_custom_call.1} parent=11 // pred_region
          _
        $region24: #{tpu_custom_call.1} parent=11 // pred_fallthru
          _
        // Predicated region
        $region25: #{tpu_custom_call.1} parent=11 // pred_check
          %p265 = pneg %p131
        $region26: #{tpu_custom_call.1} parent=11 // pred_check_branch
          %267 = sbr.rel (%p265) target = $region28
        $region27: #{tpu_custom_call.1} parent=11 // pred_region
          _
        $region28: #{tpu_custom_call.1} parent=11 // pred_fallthru
          _
        // Predicated region
        $region29: #{tpu_custom_call.1} parent=11 // pred_check
          %p268 = pneg %p152
        $region30: #{tpu_custom_call.1} parent=11 // pred_check_branch
          %270 = sbr.rel (%p268) target = $region32
        $region31: #{tpu_custom_call.1} parent=11 // pred_region
          _
        $region32: #{tpu_custom_call.1} parent=11 // pred_fallthru
          _
        // Predicated region
        $region33: #{tpu_custom_call.1} parent=11 // pred_check
          %p271 = pneg %p173
        $region34: #{tpu_custom_call.1} parent=11 // pred_check_branch
          %273 = sbr.rel (%p271) target = $region36
        $region35: #{tpu_custom_call.1} parent=11 // pred_region
          _
        $region36: #{tpu_custom_call.1} parent=11 // pred_fallthru
          _
        // Predicated region
        $region37: #{tpu_custom_call.1} parent=11 // pred_check
          %p274 = pneg %p194
        $region38: #{tpu_custom_call.1} parent=11 // pred_check_branch
          %276 = sbr.rel (%p274) target = $region40
        $region39: #{tpu_custom_call.1} parent=11 // pred_region
          _
        $region40: #{tpu_custom_call.1} parent=11 // pred_fallthru
          _
        // Predicated region
        $region41: #{tpu_custom_call.1} parent=11 // pred_check
          %p277 = pneg %p215
        $region42: #{tpu_custom_call.1} parent=11 // pred_check_branch
          %279 = sbr.rel (%p277) target = $region44
        $region43: #{tpu_custom_call.1} parent=11 // pred_region
          _
        $region44: #{tpu_custom_call.1} parent=11 // pred_fallthru
          _
      $region12: #{tpu_custom_call.1} parent=5 // pred_fallthru
        _
      %p280 = scmp.lt.s32.totalorder %s21, 2
      // Predicated region
      $region45: #{tpu_custom_call.1} parent=5 // pred_check
        %p281 = pneg %p280
      $region46: #{tpu_custom_call.1} parent=5 // pred_check_branch
        %283 = sbr.rel (%p281) target = $region48
      $region47: #{tpu_custom_call.1} parent=5 // pred_region
        // Predicated region
        $region49: #{tpu_custom_call.1} parent=47 // pred_check
          %p284 = pneg %p41
        $region50: #{tpu_custom_call.1} parent=47 // pred_check_branch
          %286 = sbr.rel (%p284) target = $region52
        $region51: #{tpu_custom_call.1} parent=47 // pred_region
          %s287 = sand.u32 %s31, 1
          %s288 = scalar_lea.sflag [#allocation3], %s287
          %s289 = sand.u32 %s31, 1
          %s290 = smul.addr %s289, 16
          %s291 = scalar_lea.vmem [#allocation2], %s290
          %s293 = ssub.s32 256, 256
          %294 = vsyncadd %s288, %s293
          %s295 = smul.addr %s21, 2
          %s296 = smul.addr %s295, 128
          %s297 = scalar_lea.hbm %s0, %s296
          %s299 = sshll.u32 %s291, 4
          %s300 = int_to_ptr.vmem [resolvable:$true] %s299
          %302 = dma.hbm_to_vmem [thread:$0]  %s297, 256, %s300, %s288
        $region52: #{tpu_custom_call.1} parent=47 // pred_fallthru
          _
      $region48: #{tpu_custom_call.1} parent=5 // pred_fallthru
        _
      %p303 = scmp.le.s32.totalorder 1, %s21
      %p304 = scmp.lt.s32.totalorder %s21, 3
      %p305 = pnand %p303, %p304
      %p306 = pneg %p305
      // Predicated region
      $region53: #{tpu_custom_call.1} parent=5 // pred_check
        _
      $region54: #{tpu_custom_call.1} parent=5 // pred_check_branch
        %308 = sbr.rel (%p305) target = $region56
      $region55: #{tpu_custom_call.1} parent=5 // pred_region
        %s309 = ssub.s32 %s21, 1
        %s310 = sand.u32 %s34, 1
        %s311 = scalar_lea.sflag [#allocation3], %s310
        %s312 = sand.u32 %s34, 1
        %s313 = smul.addr %s312, 16
        %s314 = scalar_lea.vmem [#allocation2], %s313
        // Predicated region
        $region57: #{tpu_custom_call.1} parent=55 // pred_check
          %p315 = pneg %p47
        $region58: #{tpu_custom_call.1} parent=55 // pred_check_branch
          %317 = sbr.rel (%p315) target = $region60
        $region59: #{tpu_custom_call.1} parent=55 // pred_region
          %318 = dma.done %s311, 256
        $region60: #{tpu_custom_call.1} parent=55 // pred_fallthru
          _
        %s319 = sand.u32 %s34, 1
        %s320 = scalar_lea.sflag [#allocation3], %s319
        %s321 = sand.u32 %s34, 1
        %s322 = smul.addr %s321, 16
        %s323 = scalar_lea.vmem [#allocation2], %s322
        %p324 = pneg %p47
        %p325 = pneg %p44
        %p326 = pneg %p68
        %p327 = pneg %p65
        %p328 = pneg %p89
        %p329 = pneg %p86
        %p330 = pneg %p110
        %p331 = pneg %p107
        %p332 = pneg %p131
        %p333 = pneg %p128
        %p334 = pneg %p152
        %p335 = pneg %p149
        %p336 = pneg %p173
        %p337 = pneg %p170
        %p338 = pneg %p194
        %p339 = pneg %p191
        %p340 = pneg %p215
        %p341 = pneg %p212
        %p342 = pneg %p241
        %p343 = pneg %p238
        %s344 = sand.u32 %s228, 1
        %s345 = scalar_lea.sflag [#allocation4], %s344
        %s346 = sand.u32 %s228, 1
        %s347 = smul.addr %s346, 16
        %s348 = scalar_lea.vmem [#allocation5], %s347
        %v349 = vld [vmem:[%s314] sm:$0xff]
        %v350 = vld [vmem:[%s314 + $0x8] sm:$0xff]
        %v351 = vadd.f32 %v349, %v350
        %352 = vadd.xlane.f32.xlu0 %v351
        %v353 = vpop.xlane.xlu0 %352
        %v354 = vmul.f32 %v349, %v349
        %v355 = vmul.f32 %v350, %v350
        %v356 = vadd.f32 %v354, %v355
        %357 = vadd.xlane.f32.xlu0 %v356
        %v358 = vpop.xlane.xlu0 %357
        %v359 = vmul.f32 %v353, 0.00390625
        %v360 = vmul.f32 %v359, %v353
        %v361 = vsub.f32 %v358, %v360
        %v362 = vmul.f32 %v361, 0.003921569
        %v363 = vmax.f32 %v362, 0.0
        %v364 = vadd.f32 %v363, 1e-05
        %v365 = vrsqrt.pop %v364
        %v366 = vld [vmem:[%s1] sm:$0x3]
        %v367 = vld [vmem:[%s2] sm:$0x1]
        %v368 = vld [vmem:[%s3] sm:$0xff]
        %v369 = vld [vmem:[%s4] sm:$0x1]
        %v370 = vld [vmem:[%s5] sm:$0xff]
        %v371 = vld [vmem:[%s6] sm:$0x1]
        %v372 = vld [vmem:[%s7] sm:$0x1]
        %v373 = vld [vmem:[%s8] sm:$0x1]
        %v375 = vlaneseq
        %v376 = vand.u32 %v375, 127
        %v377 = vlaneseq
        %v378 = vshrl.u32 %v377, 7
        %v379 = vsub.s32 %v376, %v378
        %v380 = vrot.slane %v359, %v379
        %vm381 = vcmask 64512
        %v382 = vsel %vm381, %v380, 0
        %v385 = vsel %vm381, %v366, 0
        %387 = vmatprep.subr.mxu0 0.0
        %388 = vmatpush1.xpose.msra.mxu0 %v385
        %389 = vmatprep.subr.mxu0 0.0
        %390 = vmatpush1.xpose.msra.mxu0 0.0
        %391 = vmatprep.subr.mxu0 0.0
        %392 = vmatpush1.xpose.msra.mxu0 0.0
        %393 = vmatprep.subr.mxu0 0.0
        %394 = vmatpush1.xpose.msra.mxu0 0.0
        %395 = vmatprep.subr.mxu0 0.0
        %396 = vmatpush1.xpose.msra.mxu0 0.0
        %397 = vmatprep.subr.mxu0 0.0
        %398 = vmatpush1.xpose.msra.mxu0 0.0
        %399 = vmatprep.subr.mxu0 0.0
        %400 = vmatpush1.xpose.msra.mxu0 0.0
        %401 = vmatprep.subr.mxu0 0.0
        %402 = vmatpush1.xpose.msra.mxu0 0.0
        %403 = vmatprep.subr.mxu0 0.0
        %404 = vmatpush1.xpose.msra.mxu0 0.0
        %405 = vmatprep.subr.mxu0 0.0
        %406 = vmatpush1.xpose.msra.mxu0 0.0
        %407 = vmatprep.subr.mxu0 0.0
        %408 = vmatpush1.xpose.msra.mxu0 0.0
        %409 = vmatprep.subr.mxu0 0.0
        %410 = vmatpush1.xpose.msra.mxu0 0.0
        %411 = vmatprep.subr.mxu0 0.0
        %412 = vmatpush1.xpose.msra.mxu0 0.0
        %413 = vmatprep.subr.mxu0 0.0
        %414 = vmatpush1.xpose.msra.mxu0 0.0
        %415 = vmatprep.subr.mxu0 0.0
        %416 = vmatpush1.xpose.msra.mxu0 0.0
        %417 = vmatprep.subr.mxu0 0.0
        %418 = vmatpush1.xpose.msra.mxu0 0.0
        %419 = vmatprep.subr.mxu0 0.0
        %420 = vmatpush1.xpose.msra.mxu0 0.0
        %421 = vmatprep.subr.mxu0 0.0
        %422 = vmatpush1.xpose.msra.mxu0 0.0
        %423 = vmatprep.subr.mxu0 0.0
        %424 = vmatpush1.xpose.msra.mxu0 0.0
        %425 = vmatprep.subr.mxu0 0.0
        %426 = vmatpush1.xpose.msra.mxu0 0.0
        %427 = vmatprep.subr.mxu0 0.0
        %428 = vmatpush1.xpose.msra.mxu0 0.0
        %429 = vmatprep.subr.mxu0 0.0
        %430 = vmatpush1.xpose.msra.mxu0 0.0
        %431 = vmatprep.subr.mxu0 0.0
        %432 = vmatpush1.xpose.msra.mxu0 0.0
        %433 = vmatprep.subr.mxu0 0.0
        %434 = vmatpush1.xpose.msra.mxu0 0.0
        %435 = vmatprep.subr.mxu0 0.0
        %436 = vmatpush1.xpose.msra.mxu0 0.0
        %437 = vmatprep.subr.mxu0 0.0
        %438 = vmatpush1.xpose.msra.mxu0 0.0
        %439 = vmatprep.subr.mxu0 0.0
        %440 = vmatpush1.xpose.msra.mxu0 0.0
        %441 = vmatprep.subr.mxu0 0.0
        %442 = vmatpush1.xpose.msra.mxu0 0.0
        %443 = vmatprep.subr.mxu0 0.0
        %444 = vmatpush1.xpose.msra.mxu0 0.0
        %445 = vmatprep.subr.mxu0 0.0
        %446 = vmatpush1.xpose.msra.mxu0 0.0
        %447 = vmatprep.subr.mxu0 0.0
        %448 = vmatpush1.xpose.msra.mxu0 0.0
        %449 = vmatprep.subr.mxu0 0.0
        %450 = vmatpush1.xpose.msra.mxu0 0.0
        %451 = vmatprep.mubr.f32.mxu0 0.0
        %452 = vmatmul.mubr.f32.gmra.mrb[0].mxu0 %v382
        %v453 = vpop.f32.mrb[0].mxu0
        %v454 = vadd.f32 %v367, %v453
        %v455 = vpop.f32.mrb[0].mxu0
        %456 = vdwg.mxu0
        %v457 = vmax.f32 %v454, 0.0
        %vm458 = vcmask 15360
        %v460 = vsel %vm458, %v457, 0
        %v463 = vsel %vm458, %v368, 0
        %465 = vmatprep.subr.mxu0 0.0
        %466 = vmatpush1.xpose.msra.mxu0 %v463
        %467 = vmatprep.subr.mxu0 0.0
        %468 = vmatpush1.xpose.msra.mxu0 0.0
        %469 = vmatprep.subr.mxu0 0.0
        %470 = vmatpush1.xpose.msra.mxu0 0.0
        %471 = vmatprep.subr.mxu0 0.0
        %472 = vmatpush1.xpose.msra.mxu0 0.0
        %473 = vmatprep.subr.mxu0 0.0
        %474 = vmatpush1.xpose.msra.mxu0 0.0
        %475 = vmatprep.subr.mxu0 0.0
        %476 = vmatpush1.xpose.msra.mxu0 0.0
        %477 = vmatprep.subr.mxu0 0.0
        %478 = vmatpush1.xpose.msra.mxu0 0.0
        %479 = vmatprep.subr.mxu0 0.0
        %480 = vmatpush1.xpose.msra.mxu0 0.0
        %481 = vmatprep.subr.mxu0 0.0
        %482 = vmatpush1.xpose.msra.mxu0 0.0
        %483 = vmatprep.subr.mxu0 0.0
        %484 = vmatpush1.xpose.msra.mxu0 0.0
        %485 = vmatprep.subr.mxu0 0.0
        %486 = vmatpush1.xpose.msra.mxu0 0.0
        %487 = vmatprep.subr.mxu0 0.0
        %488 = vmatpush1.xpose.msra.mxu0 0.0
        %489 = vmatprep.subr.mxu0 0.0
        %490 = vmatpush1.xpose.msra.mxu0 0.0
        %491 = vmatprep.subr.mxu0 0.0
        %492 = vmatpush1.xpose.msra.mxu0 0.0
        %493 = vmatprep.subr.mxu0 0.0
        %494 = vmatpush1.xpose.msra.mxu0 0.0
        %495 = vmatprep.subr.mxu0 0.0
        %496 = vmatpush1.xpose.msra.mxu0 0.0
        %497 = vmatprep.subr.mxu0 0.0
        %498 = vmatpush1.xpose.msra.mxu0 0.0
        %499 = vmatprep.subr.mxu0 0.0
        %500 = vmatpush1.xpose.msra.mxu0 0.0
        %501 = vmatprep.subr.mxu0 0.0
        %502 = vmatpush1.xpose.msra.mxu0 0.0
        %503 = vmatprep.subr.mxu0 0.0
        %504 = vmatpush1.xpose.msra.mxu0 0.0
        %505 = vmatprep.subr.mxu0 0.0
        %506 = vmatpush1.xpose.msra.mxu0 0.0
        %507 = vmatprep.subr.mxu0 0.0
        %508 = vmatpush1.xpose.msra.mxu0 0.0
        %509 = vmatprep.subr.mxu0 0.0
        %510 = vmatpush1.xpose.msra.mxu0 0.0
        %511 = vmatprep.subr.mxu0 0.0
        %512 = vmatpush1.xpose.msra.mxu0 0.0
        %513 = vmatprep.subr.mxu0 0.0
        %514 = vmatpush1.xpose.msra.mxu0 0.0
        %515 = vmatprep.subr.mxu0 0.0
        %516 = vmatpush1.xpose.msra.mxu0 0.0
        %517 = vmatprep.subr.mxu0 0.0
        %518 = vmatpush1.xpose.msra.mxu0 0.0
        %519 = vmatprep.subr.mxu0 0.0
        %520 = vmatpush1.xpose.msra.mxu0 0.0
        %521 = vmatprep.subr.mxu0 0.0
        %522 = vmatpush1.xpose.msra.mxu0 0.0
        %523 = vmatprep.subr.mxu0 0.0
        %524 = vmatpush1.xpose.msra.mxu0 0.0
        %525 = vmatprep.subr.mxu0 0.0
        %526 = vmatpush1.xpose.msra.mxu0 0.0
        %527 = vmatprep.subr.mxu0 0.0
        %528 = vmatpush1.xpose.msra.mxu0 0.0
        %529 = vmatprep.mubr.f32.mxu0 0.0
        %530 = vmatmul.mubr.f32.gmra.mrb[0].mxu0 %v460
        %v531 = vpop.f32.mrb[0].mxu0
        %v532 = vadd.f32 %v369, %v531
        %v533 = vpop.f32.mrb[0].mxu0
        %534 = vdwg.mxu0
        %v536 = vsel %vm458, %v370, 0
        %538 = vmatprep.subr.mxu0 0.0
        %539 = vmatpush1.xpose.msra.mxu0 %v536
        %540 = vmatprep.subr.mxu0 0.0
        %541 = vmatpush1.xpose.msra.mxu0 0.0
        %542 = vmatprep.subr.mxu0 0.0
        %543 = vmatpush1.xpose.msra.mxu0 0.0
        %544 = vmatprep.subr.mxu0 0.0
        %545 = vmatpush1.xpose.msra.mxu0 0.0
        %546 = vmatprep.subr.mxu0 0.0
        %547 = vmatpush1.xpose.msra.mxu0 0.0
        %548 = vmatprep.subr.mxu0 0.0
        %549 = vmatpush1.xpose.msra.mxu0 0.0
        %550 = vmatprep.subr.mxu0 0.0
        %551 = vmatpush1.xpose.msra.mxu0 0.0
        %552 = vmatprep.subr.mxu0 0.0
        %553 = vmatpush1.xpose.msra.mxu0 0.0
        %554 = vmatprep.subr.mxu0 0.0
        %555 = vmatpush1.xpose.msra.mxu0 0.0
        %556 = vmatprep.subr.mxu0 0.0
        %557 = vmatpush1.xpose.msra.mxu0 0.0
        %558 = vmatprep.subr.mxu0 0.0
        %559 = vmatpush1.xpose.msra.mxu0 0.0
        %560 = vmatprep.subr.mxu0 0.0
        %561 = vmatpush1.xpose.msra.mxu0 0.0
        %562 = vmatprep.subr.mxu0 0.0
        %563 = vmatpush1.xpose.msra.mxu0 0.0
        %564 = vmatprep.subr.mxu0 0.0
        %565 = vmatpush1.xpose.msra.mxu0 0.0
        %566 = vmatprep.subr.mxu0 0.0
        %567 = vmatpush1.xpose.msra.mxu0 0.0
        %568 = vmatprep.subr.mxu0 0.0
        %569 = vmatpush1.xpose.msra.mxu0 0.0
        %570 = vmatprep.subr.mxu0 0.0
        %571 = vmatpush1.xpose.msra.mxu0 0.0
        %572 = vmatprep.subr.mxu0 0.0
        %573 = vmatpush1.xpose.msra.mxu0 0.0
        %574 = vmatprep.subr.mxu0 0.0
        %575 = vmatpush1.xpose.msra.mxu0 0.0
        %576 = vmatprep.subr.mxu0 0.0
        %577 = vmatpush1.xpose.msra.mxu0 0.0
        %578 = vmatprep.subr.mxu0 0.0
        %579 = vmatpush1.xpose.msra.mxu0 0.0
        %580 = vmatprep.subr.mxu0 0.0
        %581 = vmatpush1.xpose.msra.mxu0 0.0
        %582 = vmatprep.subr.mxu0 0.0
        %583 = vmatpush1.xpose.msra.mxu0 0.0
        %584 = vmatprep.subr.mxu0 0.0
        %585 = vmatpush1.xpose.msra.mxu0 0.0
        %586 = vmatprep.subr.mxu0 0.0
        %587 = vmatpush1.xpose.msra.mxu0 0.0
        %588 = vmatprep.subr.mxu0 0.0
        %589 = vmatpush1.xpose.msra.mxu0 0.0
        %590 = vmatprep.subr.mxu0 0.0
        %591 = vmatpush1.xpose.msra.mxu0 0.0
        %592 = vmatprep.subr.mxu0 0.0
        %593 = vmatpush1.xpose.msra.mxu0 0.0
        %594 = vmatprep.subr.mxu0 0.0
        %595 = vmatpush1.xpose.msra.mxu0 0.0
        %596 = vmatprep.subr.mxu0 0.0
        %597 = vmatpush1.xpose.msra.mxu0 0.0
        %598 = vmatprep.subr.mxu0 0.0
        %599 = vmatpush1.xpose.msra.mxu0 0.0
        %600 = vmatprep.subr.mxu0 0.0
        %601 = vmatpush1.xpose.msra.mxu0 0.0
        %602 = vmatprep.mubr.f32.mxu0 0.0
        %603 = vmatmul.mubr.f32.gmra.mrb[0].mxu0 %v460
        %v604 = vpop.f32.mrb[0].mxu0
        %v605 = vadd.f32 %v371, %v604
        %v606 = vpop.f32.mrb[0].mxu0
        %607 = vdwg.mxu0
        %v608 = vadd.f32 %v532, 1.0
        %v609 = vmul.f32 %v608, %v372
        %v611 = vlaneseq
        %v612 = vshrl.u32 %v611, 7
        %v613 = vsub.s32 %v376, %v612
        %v614 = vrot.slane %v365, %v613
        %v616 = vmul.f32 %v609, %v614
        %v617 = vmul.f32 %v605, %v373
        %v619 = vmul.f32 %v616, %v380
        %v620 = vsub.f32 %v617, %v619
        %v621 = vlaneseq
        %v622 = vshrl.u32 %v621, 7
        %v623 = vsub.s32 0, %v622
        %v624 = vrot.slane %v616, %v623
        %626 = vbcast.lane.b32.xlu0 %v624, 256
        %v627 = vpop.permute.xlu0 %626
        %v628 = vmul.f32 %v349, %v627
        %v629 = vmul.f32 %v350, %v627
        %v630 = vlaneseq
        %v631 = vshrl.u32 %v630, 7
        %v632 = vsub.s32 0, %v631
        %v633 = vrot.slane %v620, %v632
        %635 = vbcast.lane.b32.xlu0 %v633, 256
        %v636 = vpop.permute.xlu0 %635
        %v637 = vadd.f32 %v628, %v636
        %v638 = vadd.f32 %v629, %v636
        %639 = vst [vmem:[%s348] sm:$0xff] %v637
        %640 = vst [vmem:[%s348 + $0x8] sm:$0xff] %v638
        %s641 = sand.u32 %s228, 1
        %s642 = scalar_lea.sflag [#allocation4], %s641
        %s643 = sand.u32 %s228, 1
        %s644 = smul.addr %s643, 16
        %s645 = scalar_lea.vmem [#allocation5], %s644
        // Predicated region
        $region61: #{tpu_custom_call.1} parent=55 // pred_check
          %p646 = pneg %p238
        $region62: #{tpu_custom_call.1} parent=55 // pred_check_branch
          %648 = sbr.rel (%p646) target = $region64
        $region63: #{tpu_custom_call.1} parent=55 // pred_region
          %s650 = ssub.s32 256, 256
          %651 = vsyncadd %s642, %s650
          %s652 = smul.addr %s26, 2
          %s653 = smul.addr %s652, 128
          %s654 = scalar_lea.hbm %s9, %s653
          %s656 = sshll.u32 %s645, 4
          %s657 = int_to_ptr.vmem [resolvable:$true] %s656
          %659 = dma.vmem_to_hbm [thread:$0]  %s657, 256, %s654, %s642
        $region64: #{tpu_custom_call.1} parent=55 // pred_fallthru
          _
      $region56: #{tpu_custom_call.1} parent=5 // pred_fallthru
        _
      %p660 = scmp.le.s32.totalorder 2, %s21
      // Predicated region
      $region65: #{tpu_custom_call.1} parent=5 // pred_check
        %p661 = pneg %p660
      $region66: #{tpu_custom_call.1} parent=5 // pred_check_branch
        %663 = sbr.rel (%p661) target = $region68
      $region67: #{tpu_custom_call.1} parent=5 // pred_region
        %s664 = ssub.s32 %s21, 2
        // Predicated region
        $region69: #{tpu_custom_call.1} parent=67 // pred_check
          %p665 = pneg %p244
        $region70: #{tpu_custom_call.1} parent=67 // pred_check_branch
          %667 = sbr.rel (%p665) target = $region72
        $region71: #{tpu_custom_call.1} parent=67 // pred_region
          %s668 = sand.u32 %s229, 1
          %s669 = scalar_lea.sflag [#allocation4], %s668
          %s670 = sand.u32 %s229, 1
          %s671 = smul.addr %s670, 16
          %s672 = scalar_lea.vmem [#allocation5], %s671
          %673 = dma.done %s669, 256
        $region72: #{tpu_custom_call.1} parent=67 // pred_fallthru
          _
      $region68: #{tpu_custom_call.1} parent=5 // pred_fallthru
        _
    $region6: #{tpu_custom_call.1} parent=1 // loop_footer
      %s25 = sadd.s32 1, %s21
    $region7: #{tpu_custom_call.1} parent=1 // loop_footer_branch
      %20 = sbr.rel target = $region3
    $region8: #{tpu_custom_call.1} parent=1 // loop_exit
      _
    %674 = vsyncpa [#allocation3], 1
    %s675 = scalar_lea.sflag [#allocation3], 1
    %676 = vsyncpa %s675, 1
    %677 = vsyncpa [#allocation4], 1
    %s678 = scalar_lea.sflag [#allocation4], 1
    %679 = vsyncpa %s678, 1

</llo_original>
